<compile_context>
chip_gen: v5e
topology: v5e:2x2
jax: 0.10.0
libtpu: 0.0.40
codegen_flags: <defaults>
</compile_context>

<pallas_src>
import functools

import jax
import jax.numpy as jnp
from jax.experimental import pallas as pl
from jax.experimental.pallas import tpu as pltpu

LANE = 128
SUB = 8


def _make_dice_kernel(n_classes, ts, fuse_softmax, needs_pad_mask):
    """Kernel body for a given static configuration."""

    def fold(x):
        # (ts, 128) -> (8, 128): whole-vreg adds only (VALU), no cross-lane ops.
        return jnp.sum(x.reshape(ts // SUB, SUB, LANE), axis=0)

    def kernel(score_ref, labels_ref, i_out_ref, d_out_ref, i_acc, d_acc):
        n = pl.program_id(1)

        @pl.when(n == 0)
        def _():
            # Per-batch reset: keeps each b self-contained (B axis "parallel").
            i_acc[...] = jnp.zeros_like(i_acc)
            d_acc[...] = jnp.zeros_like(d_acc)

        labels = labels_ref[0].astype(jnp.int32)               # (ts, 128)

        if fuse_softmax:
            logits = score_ref[0].astype(jnp.float32)          # (C, ts, 128)
            m = jnp.max(logits, axis=0, keepdims=True)         # C-1 vreg maxes
            e = jnp.exp(logits - m)                            # EUP slot
            inv = pl.reciprocal(jnp.sum(e, axis=0, keepdims=True), approx=True)
            probs = e * inv
            if needs_pad_mask:
                # Padded pixels (label == -1, logits == 0) would softmax to
                # 1/C and pollute z_sum; zero them.  Only emitted when the
                # spatial axis actually required padding.
                probs = jnp.where((labels >= 0)[None, :, :], probs, 0.0)
        # Non-softmax path needs no mask: padded score is already 0 and the
        # padded label (-1) matches no class.

        for c in range(n_classes):
            if fuse_softmax:
                sc = probs[c]                                  # (ts, 128)
            else:
                sc = score_ref[0, c].astype(jnp.float32)       # (ts, 128)
            match = labels == c
            sq = sc * sc
            i_part = jnp.where(match, sc, 0.0)                 # score * onehot
            d_part = jnp.where(match, sq + 1.0, sq)            # score^2 + onehot
            i_acc[c] += fold(i_part)
            d_acc[c] += fold(d_part)

        @pl.when(n == pl.num_programs(1) - 1)
        def _():
            # Lane/sublane-dense stores; dice combine happens in the wrapper.
            i_out_ref[0] = i_acc[...]
            d_out_ref[0] = d_acc[...]

    return kernel


def _pick_tile(n_classes, s_rows, ts_max, score_bytes, label_bytes):
    """Sublane tile: largest multiple of 32 whose double-buffered input tiles
    fit a ~16 MiB VMEM budget.  Accumulators are (C, 8, 128) (independent of
    the tile) so they are excluded.  Multiple-of-32 keeps int8 labels on their
    native (32, 128) tile and bf16 score on (16, 128)."""
    per_row = LANE * (2 * n_classes * score_bytes + 2 * label_bytes)
    budget = 16 * 1024 * 1024
    cap = max(32, min(ts_max, budget // per_row))
    cap -= cap % 32
    cap = max(32, cap)
    if s_rows <= cap:
        return max(32, -(-s_rows // 32) * 32)    # single tile, rounded to 32
    return cap


@functools.partial(jax.jit,
                   static_argnames=("n_classes", "softmax", "stream_bf16",
                                    "ts_max"))
def dice_loss(inputs, target, *, n_classes, weight=None, softmax=False,
              stream_bf16=False, ts_max=1024):
    """inputs: (B, C, H, W) float; target: (B, H, W) integer class ids.

    Matches DiceLoss.forward(inputs, target, weight, softmax).
    stream_bf16=True streams the score tensor as bf16 (in-kernel accumulation
    stays f32) to halve the dominant HBM stream on bandwidth-bound v5e/v6e.
    """
    B, C, H, W = inputs.shape
    assert C == n_classes
    HW = H * W

    score_dtype = jnp.bfloat16 if stream_bf16 else jnp.float32
    label_dtype = jnp.int8 if n_classes <= 127 else jnp.int32

    s_rows = -(-HW // LANE)
    ts = _pick_tile(C, s_rows, ts_max,
                    jnp.dtype(score_dtype).itemsize,
                    jnp.dtype(label_dtype).itemsize)
    num_tiles = -(-s_rows // ts)
    s_pad = num_tiles * ts
    flat_pad = s_pad * LANE - HW

    score = inputs.astype(score_dtype).reshape(B, C, HW)
    labels = target.astype(label_dtype).reshape(B, HW)
    if flat_pad:
        # Single contiguous tail pad so every tile is full: padded score = 0,
        # padded label = -1 contribute nothing (hot loop stays mask-free).
        score = jnp.pad(score, ((0, 0), (0, 0), (0, flat_pad)))
        labels = jnp.pad(labels, ((0, 0), (0, flat_pad)), constant_values=-1)
    score = score.reshape(B, C, s_pad, LANE)
    labels = labels.reshape(B, s_pad, LANE)

    kernel = _make_dice_kernel(C, ts, bool(softmax),
                               bool(softmax and flat_pad > 0))

    # TODO(synk): optionally sweep pipeline_mode=pl.Buffered(3) on the score
    # BlockSpec for v6e once tiles shrink (bf16 path); default 2-deep is fine.
    i_part, d_part = pl.pallas_call(
        kernel,
        out_shape=(jax.ShapeDtypeStruct((B, C, SUB, LANE), jnp.float32),
                   jax.ShapeDtypeStruct((B, C, SUB, LANE), jnp.float32)),
        grid_spec=pltpu.PrefetchScalarGridSpec(
            num_scalar_prefetch=0,
            grid=(B, num_tiles),
            in_specs=[
                pl.BlockSpec((1, C, ts, LANE), lambda b, n: (b, 0, n, 0)),
                pl.BlockSpec((1, ts, LANE), lambda b, n: (b, n, 0)),
            ],
            out_specs=(
                pl.BlockSpec((1, C, SUB, LANE), lambda b, n: (b, 0, 0, 0)),
                pl.BlockSpec((1, C, SUB, LANE), lambda b, n: (b, 0, 0, 0)),
            ),
            scratch_shapes=[
                pltpu.VMEM((C, SUB, LANE), jnp.float32),   # intersect partials
                pltpu.VMEM((C, SUB, LANE), jnp.float32),   # z_sum + y_sum
            ],
        ),
        compiler_params=pltpu.CompilerParams(
            # Per-b accumulation is self-contained -> B can be sharded across
            # TensorCores (2x on v7x, no-op on v5e/v6e).
            dimension_semantics=("parallel", "arbitrary"),
            vmem_limit_bytes=32 * 1024 * 1024),
    )(score, labels)

    smooth = 1e-05
    i_sum = jnp.sum(i_part, axis=(0, 2, 3))                  # (C,)
    d_sum = jnp.sum(d_part, axis=(0, 2, 3))                  # (C,)
    dice = 1.0 - (2.0 * i_sum + smooth) / (d_sum + smooth)   # per-class loss
    if weight is None:
        w = jnp.ones((C,), jnp.float32)
    else:
        w = jnp.asarray(weight, jnp.float32).reshape(C)
    return jnp.sum(dice * w) / n_classes


def _dice_loss_ref(inputs, target, n_classes, weight=None, softmax=False):
    """Plain-JAX reference mirroring the PyTorch module."""
    if softmax:
        inputs = jax.nn.softmax(inputs, axis=1)
    if weight is None:
        weight = [1.0] * n_classes
    smooth = 1e-05
    loss = 0.0
    for i in range(n_classes):
        score = inputs[:, i].astype(jnp.float32)
        tgt = (target == i).astype(jnp.float32)
        intersect = jnp.sum(score * tgt)
        y_sum = jnp.sum(tgt * tgt)
        z_sum = jnp.sum(score * score)
        dice = 1.0 - (2.0 * intersect + smooth) / (z_sum + y_sum + smooth)
        loss = loss + dice * weight[i]
    return loss / n_classes


if __name__ == "__main__":
    key = jax.random.PRNGKey(0)

    def _check(B, C, H, W, *, weight=None, softmax=False, stream_bf16=False,
               ts_max=1024, seed=0, rtol=1e-4, atol=1e-6):
        k1, k2 = jax.random.split(jax.random.fold_in(key, seed))
        logits = jax.random.normal(k1, (B, C, H, W), dtype=jnp.float32)
        inp = logits if softmax else jax.nn.softmax(logits, axis=1)
        target = jax.random.randint(k2, (B, H, W), 0, C, dtype=jnp.int32)
        got = dice_loss(inp, target, n_classes=C, weight=weight,
                        softmax=softmax, stream_bf16=stream_bf16,
                        ts_max=ts_max)
        got = jax.block_until_ready(got)
        ref_inp = inp
        if stream_bf16:
            ref_inp = inp.astype(jnp.bfloat16).astype(jnp.float32)
        want = _dice_loss_ref(ref_inp, target, C, weight=weight,
                              softmax=softmax)
        assert jnp.allclose(got, want, rtol=rtol, atol=atol), (got, want)

    # Primary case: post-softmax probabilities, single 32-row tile, f32 stream.
    _check(2, 4, 16, 16, seed=0)
    # Multi-tile path (S padded to 2 tiles of 32), per-class weights, fused
    # in-kernel softmax + pad mask (approx reciprocal -> looser tolerance).
    _check(2, 5, 72, 72, weight=jnp.array([0.5, 1.0, 2.0, 1.5, 0.25]),
           softmax=True, ts_max=32, seed=1, rtol=5e-3, atol=1e-3)
    # bf16-streamed score (HBM-traffic optimization); reference uses the same
    # bf16-quantized probabilities so only accumulation order differs.
    _check(1, 3, 48, 48, stream_bf16=True, seed=2, rtol=1e-3, atol=1e-5)

    print("KERNEL_OK")
</pallas_src>

<mosaic_0001>
module attributes {stable_mosaic.version = 11 : i64} {
  func.func @kernel(%arg0: i32, %arg1: i32, %arg2: memref<1x4x32x128xf32, #tpu.memory_space<vmem>>, %arg3: memref<1x32x128xi8, #tpu.memory_space<vmem>>, %arg4: memref<1x4x8x128xf32, #tpu.memory_space<vmem>>, %arg5: memref<1x4x8x128xf32, #tpu.memory_space<vmem>>, %arg6: memref<4x8x128xf32, #tpu.memory_space<vmem>>, %arg7: memref<4x8x128xf32, #tpu.memory_space<vmem>>) attributes {dimension_semantics = [#tpu.dimension_semantics<parallel>, #tpu.dimension_semantics<arbitrary>], iteration_bounds = array<i64: 2, 1>, scalar_prefetch = 0 : i64, scratch_operands = 2 : i64, tpu.core_type = #tpu.core_type<tc>, window_params = [{transform_indices = @transform_0, window_bounds = array<i64: 1, 4, 32, 128>}, {transform_indices = @transform_1, window_bounds = array<i64: 1, 32, 128>}, {transform_indices = @transform_2, window_bounds = array<i64: 1, 4, 8, 128>}, {transform_indices = @transform_3, window_bounds = array<i64: 1, 4, 8, 128>}]} {
    %c0_i32 = arith.constant 0 : i32
    %0 = arith.cmpi eq, %arg1, %c0_i32 : i32
    %1 = arith.extui %0 : i1 to i32
    %c0_i32_0 = arith.constant 0 : i32
    %2 = arith.cmpi ne, %1, %c0_i32_0 : i32
    scf.if %2 {
      %cst_82 = arith.constant 0.000000e+00 : f32
      %113 = vector.broadcast %cst_82 : f32 to vector<4x8x128xf32>
      %c0_83 = arith.constant 0 : index
      %c0_84 = arith.constant 0 : index
      %c0_85 = arith.constant 0 : index
      %114 = vector.load %arg6[%c0_83, %c0_84, %c0_85] : memref<4x8x128xf32, #tpu.memory_space<vmem>>, vector<4x8x128xf32>
      tpu.vector_store %arg6[%c0_83, %c0_84, %c0_85], %113 {strides = array<i32>} : memref<4x8x128xf32, #tpu.memory_space<vmem>>, vector<4x8x128xf32>,
      %cst_86 = arith.constant 0.000000e+00 : f32
      %115 = vector.broadcast %cst_86 : f32 to vector<4x8x128xf32>
      %c0_87 = arith.constant 0 : index
      %c0_88 = arith.constant 0 : index
      %c0_89 = arith.constant 0 : index
      %116 = vector.load %arg7[%c0_87, %c0_88, %c0_89] : memref<4x8x128xf32, #tpu.memory_space<vmem>>, vector<4x8x128xf32>
      tpu.vector_store %arg7[%c0_87, %c0_88, %c0_89], %115 {strides = array<i32>} : memref<4x8x128xf32, #tpu.memory_space<vmem>>, vector<4x8x128xf32>,
    } else {
    }
    %c0 = arith.constant 0 : index
    %c0_1 = arith.constant 0 : index
    %c0_2 = arith.constant 0 : index
    %3 = vector.load %arg3[%c0, %c0_1, %c0_2] : memref<1x32x128xi8, #tpu.memory_space<vmem>>, vector<1x32x128xi8>
    %4 = vector.shape_cast %3 : vector<1x32x128xi8> to vector<32x128xi8>
    %5 = arith.extsi %4 : vector<32x128xi8> to vector<32x128xi32>
    %c0_3 = arith.constant 0 : index
    %c0_4 = arith.constant 0 : index
    %c0_5 = arith.constant 0 : index
    %c0_6 = arith.constant 0 : index
    %6 = vector.load %arg2[%c0_3, %c0_4, %c0_5, %c0_6] : memref<1x4x32x128xf32, #tpu.memory_space<vmem>>, vector<1x1x32x128xf32>
    %7 = vector.shape_cast %6 : vector<1x1x32x128xf32> to vector<32x128xf32>
    %c0_i32_7 = arith.constant 0 : i32
    %8 = vector.broadcast %c0_i32_7 : i32 to vector<32x128xi32>
    %9 = arith.cmpi eq, %5, %8 : vector<32x128xi32>
    %10 = arith.mulf %7, %7 : vector<32x128xf32>
    %cst = arith.constant 0.000000e+00 : f32
    %11 = vector.broadcast %cst : f32 to vector<32x128xf32>
    %12 = arith.select %9, %7, %11 : vector<32x128xi1>, vector<32x128xf32>
    %cst_8 = arith.constant 1.000000e+00 : f32
    %13 = vector.broadcast %cst_8 : f32 to vector<32x128xf32>
    %14 = arith.addf %10, %13 : vector<32x128xf32>
    %15 = arith.select %9, %14, %10 : vector<32x128xi1>, vector<32x128xf32>
    %c0_9 = arith.constant 0 : index
    %c0_10 = arith.constant 0 : index
    %c0_11 = arith.constant 0 : index
    %16 = vector.load %arg6[%c0_9, %c0_10, %c0_11] : memref<4x8x128xf32, #tpu.memory_space<vmem>>, vector<1x8x128xf32>
    %17 = vector.shape_cast %16 : vector<1x8x128xf32> to vector<8x128xf32>
    %18 = vector.shape_cast %12 : vector<32x128xf32> to vector<4x8x128xf32>
    %cst_12 = arith.constant dense<0.000000e+00> : vector<8x128xf32>
    %19 = vector.multi_reduction <add>, %18, %cst_12 [0] : vector<4x8x128xf32> to vector<8x128xf32>
    %20 = arith.addf %17, %19 : vector<8x128xf32>
    %c0_13 = arith.constant 0 : index
    %c0_14 = arith.constant 0 : index
    %c0_15 = arith.constant 0 : index
    %21 = vector.load %arg6[%c0_13, %c0_14, %c0_15] : memref<4x8x128xf32, #tpu.memory_space<vmem>>, vector<1x8x128xf32>
    %22 = vector.shape_cast %21 : vector<1x8x128xf32> to vector<8x128xf32>
    %23 = vector.shape_cast %20 : vector<8x128xf32> to vector<1x8x128xf32>
    tpu.vector_store %arg6[%c0_13, %c0_14, %c0_15], %23 {strides = array<i32>} : memref<4x8x128xf32, #tpu.memory_space<vmem>>, vector<1x8x128xf32>,
    %c0_16 = arith.constant 0 : index
    %c0_17 = arith.constant 0 : index
    %c0_18 = arith.constant 0 : index
    %24 = vector.load %arg7[%c0_16, %c0_17, %c0_18] : memref<4x8x128xf32, #tpu.memory_space<vmem>>, vector<1x8x128xf32>
    %25 = vector.shape_cast %24 : vector<1x8x128xf32> to vector<8x128xf32>
    %26 = vector.shape_cast %15 : vector<32x128xf32> to vector<4x8x128xf32>
    %cst_19 = arith.constant dense<0.000000e+00> : vector<8x128xf32>
    %27 = vector.multi_reduction <add>, %26, %cst_19 [0] : vector<4x8x128xf32> to vector<8x128xf32>
    %28 = arith.addf %25, %27 : vector<8x128xf32>
    %c0_20 = arith.constant 0 : index
    %c0_21 = arith.constant 0 : index
    %c0_22 = arith.constant 0 : index
    %29 = vector.load %arg7[%c0_20, %c0_21, %c0_22] : memref<4x8x128xf32, #tpu.memory_space<vmem>>, vector<1x8x128xf32>
    %30 = vector.shape_cast %29 : vector<1x8x128xf32> to vector<8x128xf32>
    %31 = vector.shape_cast %28 : vector<8x128xf32> to vector<1x8x128xf32>
    tpu.vector_store %arg7[%c0_20, %c0_21, %c0_22], %31 {strides = array<i32>} : memref<4x8x128xf32, #tpu.memory_space<vmem>>, vector<1x8x128xf32>,
    %c0_23 = arith.constant 0 : index
    %c1 = arith.constant 1 : index
    %c0_24 = arith.constant 0 : index
    %c0_25 = arith.constant 0 : index
    %32 = vector.load %arg2[%c0_23, %c1, %c0_24, %c0_25] : memref<1x4x32x128xf32, #tpu.memory_space<vmem>>, vector<1x1x32x128xf32>
    %33 = vector.shape_cast %32 : vector<1x1x32x128xf32> to vector<32x128xf32>
    %c1_i32 = arith.constant 1 : i32
    %34 = vector.broadcast %c1_i32 : i32 to vector<32x128xi32>
    %35 = arith.cmpi eq, %5, %34 : vector<32x128xi32>
    %36 = arith.mulf %33, %33 : vector<32x128xf32>
    %cst_26 = arith.constant 0.000000e+00 : f32
    %37 = vector.broadcast %cst_26 : f32 to vector<32x128xf32>
    %38 = arith.select %35, %33, %37 : vector<32x128xi1>, vector<32x128xf32>
    %cst_27 = arith.constant 1.000000e+00 : f32
    %39 = vector.broadcast %cst_27 : f32 to vector<32x128xf32>
    %40 = arith.addf %36, %39 : vector<32x128xf32>
    %41 = arith.select %35, %40, %36 : vector<32x128xi1>, vector<32x128xf32>
    %c1_28 = arith.constant 1 : index
    %c0_29 = arith.constant 0 : index
    %c0_30 = arith.constant 0 : index
    %42 = vector.load %arg6[%c1_28, %c0_29, %c0_30] : memref<4x8x128xf32, #tpu.memory_space<vmem>>, vector<1x8x128xf32>
    %43 = vector.shape_cast %42 : vector<1x8x128xf32> to vector<8x128xf32>
    %44 = vector.shape_cast %38 : vector<32x128xf32> to vector<4x8x128xf32>
    %cst_31 = arith.constant dense<0.000000e+00> : vector<8x128xf32>
    %45 = vector.multi_reduction <add>, %44, %cst_31 [0] : vector<4x8x128xf32> to vector<8x128xf32>
    %46 = arith.addf %43, %45 : vector<8x128xf32>
    %c1_32 = arith.constant 1 : index
    %c0_33 = arith.constant 0 : index
    %c0_34 = arith.constant 0 : index
    %47 = vector.load %arg6[%c1_32, %c0_33, %c0_34] : memref<4x8x128xf32, #tpu.memory_space<vmem>>, vector<1x8x128xf32>
    %48 = vector.shape_cast %47 : vector<1x8x128xf32> to vector<8x128xf32>
    %49 = vector.shape_cast %46 : vector<8x128xf32> to vector<1x8x128xf32>
    tpu.vector_store %arg6[%c1_32, %c0_33, %c0_34], %49 {strides = array<i32>} : memref<4x8x128xf32, #tpu.memory_space<vmem>>, vector<1x8x128xf32>,
    %c1_35 = arith.constant 1 : index
    %c0_36 = arith.constant 0 : index
    %c0_37 = arith.constant 0 : index
    %50 = vector.load %arg7[%c1_35, %c0_36, %c0_37] : memref<4x8x128xf32, #tpu.memory_space<vmem>>, vector<1x8x128xf32>
    %51 = vector.shape_cast %50 : vector<1x8x128xf32> to vector<8x128xf32>
    %52 = vector.shape_cast %41 : vector<32x128xf32> to vector<4x8x128xf32>
    %cst_38 = arith.constant dense<0.000000e+00> : vector<8x128xf32>
    %53 = vector.multi_reduction <add>, %52, %cst_38 [0] : vector<4x8x128xf32> to vector<8x128xf32>
    %54 = arith.addf %51, %53 : vector<8x128xf32>
    %c1_39 = arith.constant 1 : index
    %c0_40 = arith.constant 0 : index
    %c0_41 = arith.constant 0 : index
    %55 = vector.load %arg7[%c1_39, %c0_40, %c0_41] : memref<4x8x128xf32, #tpu.memory_space<vmem>>, vector<1x8x128xf32>
    %56 = vector.shape_cast %55 : vector<1x8x128xf32> to vector<8x128xf32>
    %57 = vector.shape_cast %54 : vector<8x128xf32> to vector<1x8x128xf32>
    tpu.vector_store %arg7[%c1_39, %c0_40, %c0_41], %57 {strides = array<i32>} : memref<4x8x128xf32, #tpu.memory_space<vmem>>, vector<1x8x128xf32>,
    %c0_42 = arith.constant 0 : index
    %c2 = arith.constant 2 : index
    %c0_43 = arith.constant 0 : index
    %c0_44 = arith.constant 0 : index
    %58 = vector.load %arg2[%c0_42, %c2, %c0_43, %c0_44] : memref<1x4x32x128xf32, #tpu.memory_space<vmem>>, vector<1x1x32x128xf32>
    %59 = vector.shape_cast %58 : vector<1x1x32x128xf32> to vector<32x128xf32>
    %c2_i32 = arith.constant 2 : i32
    %60 = vector.broadcast %c2_i32 : i32 to vector<32x128xi32>
    %61 = arith.cmpi eq, %5, %60 : vector<32x128xi32>
    %62 = arith.mulf %59, %59 : vector<32x128xf32>
    %cst_45 = arith.constant 0.000000e+00 : f32
    %63 = vector.broadcast %cst_45 : f32 to vector<32x128xf32>
    %64 = arith.select %61, %59, %63 : vector<32x128xi1>, vector<32x128xf32>
    %cst_46 = arith.constant 1.000000e+00 : f32
    %65 = vector.broadcast %cst_46 : f32 to vector<32x128xf32>
    %66 = arith.addf %62, %65 : vector<32x128xf32>
    %67 = arith.select %61, %66, %62 : vector<32x128xi1>, vector<32x128xf32>
    %c2_47 = arith.constant 2 : index
    %c0_48 = arith.constant 0 : index
    %c0_49 = arith.constant 0 : index
    %68 = vector.load %arg6[%c2_47, %c0_48, %c0_49] : memref<4x8x128xf32, #tpu.memory_space<vmem>>, vector<1x8x128xf32>
    %69 = vector.shape_cast %68 : vector<1x8x128xf32> to vector<8x128xf32>
    %70 = vector.shape_cast %64 : vector<32x128xf32> to vector<4x8x128xf32>
    %cst_50 = arith.constant dense<0.000000e+00> : vector<8x128xf32>
    %71 = vector.multi_reduction <add>, %70, %cst_50 [0] : vector<4x8x128xf32> to vector<8x128xf32>
    %72 = arith.addf %69, %71 : vector<8x128xf32>
    %c2_51 = arith.constant 2 : index
    %c0_52 = arith.constant 0 : index
    %c0_53 = arith.constant 0 : index
    %73 = vector.load %arg6[%c2_51, %c0_52, %c0_53] : memref<4x8x128xf32, #tpu.memory_space<vmem>>, vector<1x8x128xf32>
    %74 = vector.shape_cast %73 : vector<1x8x128xf32> to vector<8x128xf32>
    %75 = vector.shape_cast %72 : vector<8x128xf32> to vector<1x8x128xf32>
    tpu.vector_store %arg6[%c2_51, %c0_52, %c0_53], %75 {strides = array<i32>} : memref<4x8x128xf32, #tpu.memory_space<vmem>>, vector<1x8x128xf32>,
    %c2_54 = arith.constant 2 : index
    %c0_55 = arith.constant 0 : index
    %c0_56 = arith.constant 0 : index
    %76 = vector.load %arg7[%c2_54, %c0_55, %c0_56] : memref<4x8x128xf32, #tpu.memory_space<vmem>>, vector<1x8x128xf32>
    %77 = vector.shape_cast %76 : vector<1x8x128xf32> to vector<8x128xf32>
    %78 = vector.shape_cast %67 : vector<32x128xf32> to vector<4x8x128xf32>
    %cst_57 = arith.constant dense<0.000000e+00> : vector<8x128xf32>
    %79 = vector.multi_reduction <add>, %78, %cst_57 [0] : vector<4x8x128xf32> to vector<8x128xf32>
    %80 = arith.addf %77, %79 : vector<8x128xf32>
    %c2_58 = arith.constant 2 : index
    %c0_59 = arith.constant 0 : index
    %c0_60 = arith.constant 0 : index
    %81 = vector.load %arg7[%c2_58, %c0_59, %c0_60] : memref<4x8x128xf32, #tpu.memory_space<vmem>>, vector<1x8x128xf32>
    %82 = vector.shape_cast %81 : vector<1x8x128xf32> to vector<8x128xf32>
    %83 = vector.shape_cast %80 : vector<8x128xf32> to vector<1x8x128xf32>
    tpu.vector_store %arg7[%c2_58, %c0_59, %c0_60], %83 {strides = array<i32>} : memref<4x8x128xf32, #tpu.memory_space<vmem>>, vector<1x8x128xf32>,
    %c0_61 = arith.constant 0 : index
    %c3 = arith.constant 3 : index
    %c0_62 = arith.constant 0 : index
    %c0_63 = arith.constant 0 : index
    %84 = vector.load %arg2[%c0_61, %c3, %c0_62, %c0_63] : memref<1x4x32x128xf32, #tpu.memory_space<vmem>>, vector<1x1x32x128xf32>
    %85 = vector.shape_cast %84 : vector<1x1x32x128xf32> to vector<32x128xf32>
    %c3_i32 = arith.constant 3 : i32
    %86 = vector.broadcast %c3_i32 : i32 to vector<32x128xi32>
    %87 = arith.cmpi eq, %5, %86 : vector<32x128xi32>
    %88 = arith.mulf %85, %85 : vector<32x128xf32>
    %cst_64 = arith.constant 0.000000e+00 : f32
    %89 = vector.broadcast %cst_64 : f32 to vector<32x128xf32>
    %90 = arith.select %87, %85, %89 : vector<32x128xi1>, vector<32x128xf32>
    %cst_65 = arith.constant 1.000000e+00 : f32
    %91 = vector.broadcast %cst_65 : f32 to vector<32x128xf32>
    %92 = arith.addf %88, %91 : vector<32x128xf32>
    %93 = arith.select %87, %92, %88 : vector<32x128xi1>, vector<32x128xf32>
    %c3_66 = arith.constant 3 : index
    %c0_67 = arith.constant 0 : index
    %c0_68 = arith.constant 0 : index
    %94 = vector.load %arg6[%c3_66, %c0_67, %c0_68] : memref<4x8x128xf32, #tpu.memory_space<vmem>>, vector<1x8x128xf32>
    %95 = vector.shape_cast %94 : vector<1x8x128xf32> to vector<8x128xf32>
    %96 = vector.shape_cast %90 : vector<32x128xf32> to vector<4x8x128xf32>
    %cst_69 = arith.constant dense<0.000000e+00> : vector<8x128xf32>
    %97 = vector.multi_reduction <add>, %96, %cst_69 [0] : vector<4x8x128xf32> to vector<8x128xf32>
    %98 = arith.addf %95, %97 : vector<8x128xf32>
    %c3_70 = arith.constant 3 : index
    %c0_71 = arith.constant 0 : index
    %c0_72 = arith.constant 0 : index
    %99 = vector.load %arg6[%c3_70, %c0_71, %c0_72] : memref<4x8x128xf32, #tpu.memory_space<vmem>>, vector<1x8x128xf32>
    %100 = vector.shape_cast %99 : vector<1x8x128xf32> to vector<8x128xf32>
    %101 = vector.shape_cast %98 : vector<8x128xf32> to vector<1x8x128xf32>
    tpu.vector_store %arg6[%c3_70, %c0_71, %c0_72], %101 {strides = array<i32>} : memref<4x8x128xf32, #tpu.memory_space<vmem>>, vector<1x8x128xf32>,
    %c3_73 = arith.constant 3 : index
    %c0_74 = arith.constant 0 : index
    %c0_75 = arith.constant 0 : index
    %102 = vector.load %arg7[%c3_73, %c0_74, %c0_75] : memref<4x8x128xf32, #tpu.memory_space<vmem>>, vector<1x8x128xf32>
    %103 = vector.shape_cast %102 : vector<1x8x128xf32> to vector<8x128xf32>
    %104 = vector.shape_cast %93 : vector<32x128xf32> to vector<4x8x128xf32>
    %cst_76 = arith.constant dense<0.000000e+00> : vector<8x128xf32>
    %105 = vector.multi_reduction <add>, %104, %cst_76 [0] : vector<4x8x128xf32> to vector<8x128xf32>
    %106 = arith.addf %103, %105 : vector<8x128xf32>
    %c3_77 = arith.constant 3 : index
    %c0_78 = arith.constant 0 : index
    %c0_79 = arith.constant 0 : index
    %107 = vector.load %arg7[%c3_77, %c0_78, %c0_79] : memref<4x8x128xf32, #tpu.memory_space<vmem>>, vector<1x8x128xf32>
    %108 = vector.shape_cast %107 : vector<1x8x128xf32> to vector<8x128xf32>
    %109 = vector.shape_cast %106 : vector<8x128xf32> to vector<1x8x128xf32>
    tpu.vector_store %arg7[%c3_77, %c0_78, %c0_79], %109 {strides = array<i32>} : memref<4x8x128xf32, #tpu.memory_space<vmem>>, vector<1x8x128xf32>,
    %c0_i32_80 = arith.constant 0 : i32
    %110 = arith.cmpi eq, %arg1, %c0_i32_80 : i32
    %111 = arith.extui %110 : i1 to i32
    %c0_i32_81 = arith.constant 0 : i32
    %112 = arith.cmpi ne, %111, %c0_i32_81 : i32
    scf.if %112 {
      %c0_82 = arith.constant 0 : index
      %c0_83 = arith.constant 0 : index
      %c0_84 = arith.constant 0 : index
      %113 = vector.load %arg6[%c0_82, %c0_83, %c0_84] : memref<4x8x128xf32, #tpu.memory_space<vmem>>, vector<4x8x128xf32>
      %c0_85 = arith.constant 0 : index
      %c0_86 = arith.constant 0 : index
      %c0_87 = arith.constant 0 : index
      %c0_88 = arith.constant 0 : index
      %114 = vector.load %arg4[%c0_85, %c0_86, %c0_87, %c0_88] : memref<1x4x8x128xf32, #tpu.memory_space<vmem>>, vector<1x4x8x128xf32>
      %115 = vector.shape_cast %114 : vector<1x4x8x128xf32> to vector<4x8x128xf32>
      %116 = vector.shape_cast %113 : vector<4x8x128xf32> to vector<1x4x8x128xf32>
      tpu.vector_store %arg4[%c0_85, %c0_86, %c0_87, %c0_88], %116 {strides = array<i32>} : memref<1x4x8x128xf32, #tpu.memory_space<vmem>>, vector<1x4x8x128xf32>,
      %c0_89 = arith.constant 0 : index
      %c0_90 = arith.constant 0 : index
      %c0_91 = arith.constant 0 : index
      %117 = vector.load %arg7[%c0_89, %c0_90, %c0_91] : memref<4x8x128xf32, #tpu.memory_space<vmem>>, vector<4x8x128xf32>
      %c0_92 = arith.constant 0 : index
      %c0_93 = arith.constant 0 : index
      %c0_94 = arith.constant 0 : index
      %c0_95 = arith.constant 0 : index
      %118 = vector.load %arg5[%c0_92, %c0_93, %c0_94, %c0_95] : memref<1x4x8x128xf32, #tpu.memory_space<vmem>>, vector<1x4x8x128xf32>
      %119 = vector.shape_cast %118 : vector<1x4x8x128xf32> to vector<4x8x128xf32>
      %120 = vector.shape_cast %117 : vector<4x8x128xf32> to vector<1x4x8x128xf32>
      tpu.vector_store %arg5[%c0_92, %c0_93, %c0_94, %c0_95], %120 {strides = array<i32>} : memref<1x4x8x128xf32, #tpu.memory_space<vmem>>, vector<1x4x8x128xf32>,
    } else {
    }
    return
  }
  func.func @transform_0(%arg0: i32, %arg1: i32) -> (i32, i32, i32, i32) {
    %c0_i32 = arith.constant 0 : i32
    %c0_i32_0 = arith.constant 0 : i32
    %c0_i32_1 = arith.constant 0 : i32
    return %arg0, %c0_i32, %arg1, %c0_i32_0 : i32, i32, i32, i32
  }
  func.func @transform_1(%arg0: i32, %arg1: i32) -> (i32, i32, i32) {
    %c0_i32 = arith.constant 0 : i32
    %c0_i32_0 = arith.constant 0 : i32
    return %arg0, %arg1, %c0_i32 : i32, i32, i32
  }
  func.func @transform_2(%arg0: i32, %arg1: i32) -> (i32, i32, i32, i32) {
    %c0_i32 = arith.constant 0 : i32
    %c0_i32_0 = arith.constant 0 : i32
    %c0_i32_1 = arith.constant 0 : i32
    %c0_i32_2 = arith.constant 0 : i32
    return %arg0, %c0_i32, %c0_i32_0, %c0_i32_1 : i32, i32, i32, i32
  }
  func.func @transform_3(%arg0: i32, %arg1: i32) -> (i32, i32, i32, i32) {
    %c0_i32 = arith.constant 0 : i32
    %c0_i32_0 = arith.constant 0 : i32
    %c0_i32_1 = arith.constant 0 : i32
    %c0_i32_2 = arith.constant 0 : i32
    return %arg0, %c0_i32, %c0_i32_0, %c0_i32_1 : i32, i32, i32, i32
  }
}

</mosaic_0001>

<llo_original>
// kernel: dice_loss.1
$region0: #{dice_loss.1}
  #allocation0 [shape = 'u32[]', space=smem, size = 0x4, offset = 0x4, fixed_abs, tag = 'smem constant byte address 0x4 - core index']
  #allocation1 [shape = 'u32[72,128]{1,0:T(1,128)}', space=vmem, size = 0x9000, scoped, tag = 'internal scratch']
  #allocation2 [shape = 'f32[4,8,128]{2,1,0:T(8,128)}', space=vmem, size = 0x4000, scoped, tag = 'scratch operand']
  #allocation3 [shape = 'f32[4,8,128]{2,1,0:T(8,128)}', space=vmem, size = 0x4000, scoped, tag = 'scratch operand']
  %s0 = inlined_call_operand.vmem [shape: f32[2,4,32,128], index: 0, kind: input, shape index: {}]
  %s1 = inlined_call_operand.vmem [shape: s8[2,32,128], index: 1, kind: input, shape index: {}]
  %s2 = inlined_call_operand.vmem [shape: f32[2,4,8,128], index: 2, kind: output, shape index: {0}]
  %s3 = inlined_call_operand.vmem [shape: f32[2,4,8,128], index: 3, kind: output, shape index: {1}]
  %4 = xla_tuple %s2, %s3
  %s5 = sld [smem:[#allocation0]]
  $region57: #{dice_loss.1} parent=0
    _
  %s7 = ssub.s32 1, %s5
  %s8 = scalar_select 0, %s7, %s5
  loop: start=0, step=1, limit=4
  $region2: #{dice_loss.1} parent=0 // loop_pre_header
    _
  $region3: #{dice_loss.1} parent=0 // loop_header
    %s10 = sphi 0, %s14
    %p11 = scmp.ge.s32.totalorder %s10, 4
    %s17 = sphi 0, %s29
    %s18 = sphi 0, %s25
    %s19 = sphi 0, %s17
    %s20 = sphi 0, %s18
    %s21 = sphi 0, %s19
    %s22 = sphi 0, %s20
    %s34 = sphi 0, %s36
    %s37 = sphi 0, %s34
    %s38 = sphi 0, %s37
    %s54 = sphi 0, %s38
    %s62 = sphi 0, %s64
    %s65 = sphi 0, %s62
    %s66 = sphi 0, %s65
    %s82 = sphi 0, %s66
    %s88 = sphi 0, %s90
    %s91 = sphi 0, %s88
    %s92 = sphi 0, %s91
    %s108 = sphi 0, %s92
    %s114 = sphi 0, %s116
    %s117 = sphi 0, %s114
    %s118 = sphi 0, %s117
    %s134 = sphi 0, %s118
  $region4: #{dice_loss.1} parent=0 // loop_header_branch
    %13 = sbr.rel (%p11) target = $region8
  $region5: #{dice_loss.1} parent=0 // loop_body
    %s15 = ssub.s32 %s10, 1
    %s16 = ssub.s32 %s10, 2
    %s23 = sadd.s32 1, %s18
    %p24 = scmp.ge.s32.totalorder %s23, 1
    %s25 = scalar_select %p24, 0, %s23
    %s26 = sadd.s32 1, %s17
    %s27 = scalar_select %p24, %s26, %s17
    %p28 = scmp.ge.s32.totalorder %s27, 2
    %s29 = scalar_select %p28, 0, %s27
    %s30 = ssub.s32 %s17, %s29
    %s31 = ssub.s32 %s18, %s25
    %s32 = sor.u32 %s30, %s31
    %p33 = scmp.eq.s32.totalorder %s32, 0
    %s35 = sadd.s32 %s34, 1
    %s36 = scalar_select %p33, %s34, %s35
    %p39 = pneg %p33
    %p40 = scmp.eq.s32.totalorder %s10, 1
    %p41 = por %p39, %p40
    %p42 = scmp.ne.s32.totalorder %s34, %s37
    %p43 = scmp.eq.s32.totalorder %s10, 0
    %p44 = por %p42, %p43
    %p45 = scmp.ne.s32.totalorder %s34, %s37
    %p46 = scmp.eq.s32.totalorder %s15, 1
    %p47 = por %p45, %p46
    %p48 = scmp.ne.s32.totalorder %s37, %s38
    %p49 = scmp.eq.s32.totalorder %s15, 0
    %p50 = por %p48, %p49
    %p51 = scmp.ne.s32.totalorder %s37, %s38
    %p52 = scmp.eq.s32.totalorder %s16, 1
    %p53 = por %p51, %p52
    %p55 = scmp.ne.s32.totalorder %s38, %s54
    %p56 = scmp.eq.s32.totalorder %s16, 0
    %p57 = por %p55, %p56
    %s58 = ssub.s32 %s17, %s29
    %s59 = ssub.s32 %s18, %s25
    %s60 = sor.u32 %s58, %s59
    %p61 = scmp.eq.s32.totalorder %s60, 0
    %s63 = sadd.s32 %s62, 1
    %s64 = scalar_select %p61, %s62, %s63
    %p67 = pneg %p61
    %p68 = scmp.eq.s32.totalorder %s10, 1
    %p69 = por %p67, %p68
    %p70 = scmp.ne.s32.totalorder %s62, %s65
    %p71 = scmp.eq.s32.totalorder %s10, 0
    %p72 = por %p70, %p71
    %p73 = scmp.ne.s32.totalorder %s62, %s65
    %p74 = scmp.eq.s32.totalorder %s15, 1
    %p75 = por %p73, %p74
    %p76 = scmp.ne.s32.totalorder %s65, %s66
    %p77 = scmp.eq.s32.totalorder %s15, 0
    %p78 = por %p76, %p77
    %p79 = scmp.ne.s32.totalorder %s65, %s66
    %p80 = scmp.eq.s32.totalorder %s16, 1
    %p81 = por %p79, %p80
    %p83 = scmp.ne.s32.totalorder %s66, %s82
    %p84 = scmp.eq.s32.totalorder %s16, 0
    %p85 = por %p83, %p84
    %s86 = ssub.s32 %s17, %s29
    %p87 = scmp.eq.s32.totalorder %s86, 0
    %s89 = sadd.s32 %s88, 1
    %s90 = scalar_select %p87, %s88, %s89
    %p93 = pneg %p87
    %p94 = scmp.eq.s32.totalorder %s10, 1
    %p95 = por %p93, %p94
    %p96 = scmp.ne.s32.totalorder %s88, %s91
    %p97 = scmp.eq.s32.totalorder %s10, 0
    %p98 = por %p96, %p97
    %p99 = scmp.ne.s32.totalorder %s88, %s91
    %p100 = scmp.eq.s32.totalorder %s15, 1
    %p101 = por %p99, %p100
    %p102 = scmp.ne.s32.totalorder %s91, %s92
    %p103 = scmp.eq.s32.totalorder %s15, 0
    %p104 = por %p102, %p103
    %p105 = scmp.ne.s32.totalorder %s91, %s92
    %p106 = scmp.eq.s32.totalorder %s16, 1
    %p107 = por %p105, %p106
    %p109 = scmp.ne.s32.totalorder %s92, %s108
    %p110 = scmp.eq.s32.totalorder %s16, 0
    %p111 = por %p109, %p110
    %s112 = ssub.s32 %s17, %s29
    %p113 = scmp.eq.s32.totalorder %s112, 0
    %s115 = sadd.s32 %s114, 1
    %s116 = scalar_select %p113, %s114, %s115
    %p119 = pneg %p113
    %p120 = scmp.eq.s32.totalorder %s10, 1
    %p121 = por %p119, %p120
    %p122 = scmp.ne.s32.totalorder %s114, %s117
    %p123 = scmp.eq.s32.totalorder %s10, 0
    %p124 = por %p122, %p123
    %p125 = scmp.ne.s32.totalorder %s114, %s117
    %p126 = scmp.eq.s32.totalorder %s15, 1
    %p127 = por %p125, %p126
    %p128 = scmp.ne.s32.totalorder %s117, %s118
    %p129 = scmp.eq.s32.totalorder %s15, 0
    %p130 = por %p128, %p129
    %p131 = scmp.ne.s32.totalorder %s117, %s118
    %p132 = scmp.eq.s32.totalorder %s16, 1
    %p133 = por %p131, %p132
    %p135 = scmp.ne.s32.totalorder %s118, %s134
    %p136 = scmp.eq.s32.totalorder %s16, 0
    %p137 = por %p135, %p136
    %p138 = scmp.le.s32.totalorder 1, %s10
    %p139 = scmp.lt.s32.totalorder %s10, 3
    %p140 = pnand %p138, %p139
    %p141 = pneg %p140
    // Predicated region
    $region9: #{dice_loss.1} parent=5 // pred_check
      _
    $region10: #{dice_loss.1} parent=5 // pred_check_branch
      %143 = sbr.rel (%p140) target = $region12
    $region11: #{dice_loss.1} parent=5 // pred_region
      %s144 = ssub.s32 %s10, 1
    $region12: #{dice_loss.1} parent=5 // pred_fallthru
      _
    %p145 = scmp.lt.s32.totalorder %s10, 2
    // Predicated region
    $region13: #{dice_loss.1} parent=5 // pred_check
      %p146 = pneg %p145
    $region14: #{dice_loss.1} parent=5 // pred_check_branch
      %148 = sbr.rel (%p146) target = $region16
    $region15: #{dice_loss.1} parent=5 // pred_region
      // Predicated region
      $region17: #{dice_loss.1} parent=15 // pred_check
        %p149 = pneg %p44
      $region18: #{dice_loss.1} parent=15 // pred_check_branch
        %151 = sbr.rel (%p149) target = $region20
      $region19: #{dice_loss.1} parent=15 // pred_region
        %s152 = smul.u32 4, %s18
        %p153 = scmp.lt.s32.totalorder %s17, 1
        %s154 = scalar_select %p153, %s17, 1
        %p155 = scmp.lt.s32.totalorder %s152, 3
        %s156 = scalar_select %p155, %s152, 3
        %s157 = smul.addr %s154, 16
        %s158 = sadd.s32 %s156, %s157
        %s159 = smul.addr %s158, 8
        %s160 = scalar_lea.vmem %s0, %s159
        %s161 = smul.u32 4, %s18
      $region20: #{dice_loss.1} parent=15 // pred_fallthru
        _
      // Predicated region
      $region21: #{dice_loss.1} parent=15 // pred_check
        %p162 = pneg %p72
      $region22: #{dice_loss.1} parent=15 // pred_check_branch
        %164 = sbr.rel (%p162) target = $region24
      $region23: #{dice_loss.1} parent=15 // pred_region
        %p165 = scmp.lt.s32.totalorder %s17, 1
        %s166 = scalar_select %p165, %s17, 1
        %p167 = scmp.lt.s32.totalorder %s18, 0
        %s168 = scalar_select %p167, %s18, 0
        %s169 = sadd.s32 %s168, %s166
        %s170 = smul.addr %s169, 8
        %s171 = scalar_lea.vmem %s1, %s170
      $region24: #{dice_loss.1} parent=15 // pred_fallthru
        _
    $region16: #{dice_loss.1} parent=5 // pred_fallthru
      _
    %p172 = scmp.le.s32.totalorder 1, %s10
    %p173 = scmp.lt.s32.totalorder %s10, 3
    %p174 = pnand %p172, %p173
    %p175 = pneg %p174
    // Predicated region
    $region25: #{dice_loss.1} parent=5 // pred_check
      _
    $region26: #{dice_loss.1} parent=5 // pred_check_branch
      %177 = sbr.rel (%p174) target = $region28
    $region27: #{dice_loss.1} parent=5 // pred_region
      %s178 = ssub.s32 %s10, 1
      %s179 = smul.u32 4, %s20
      %p180 = scmp.lt.s32.totalorder %s19, 1
      %s181 = scalar_select %p180, %s19, 1
      %p182 = scmp.lt.s32.totalorder %s179, 3
      %s183 = scalar_select %p182, %s179, 3
      %s184 = smul.addr %s181, 16
      %s185 = sadd.s32 %s183, %s184
      %s186 = smul.addr %s185, 8
      %s187 = scalar_lea.vmem %s0, %s186
      %p188 = pneg %p50
      %p189 = pneg %p47
      %p190 = scmp.lt.s32.totalorder %s19, 1
      %s191 = scalar_select %p190, %s19, 1
      %p192 = scmp.lt.s32.totalorder %s20, 0
      %s193 = scalar_select %p192, %s20, 0
      %s194 = sadd.s32 %s193, %s191
      %s195 = smul.addr %s194, 8
      %s196 = scalar_lea.vmem %s1, %s195
      %p197 = pneg %p78
      %p198 = pneg %p75
      %p199 = pneg %p104
      %p200 = pneg %p101
      %p201 = scmp.lt.s32.totalorder %s19, 1
      %s202 = scalar_select %p201, %s19, 1
      %s203 = smul.addr %s202, 4
      %s204 = smul.addr %s203, 8
      %s205 = scalar_lea.vmem %s2, %s204
      %p206 = pneg %p130
      %p207 = pneg %p127
      %p208 = scmp.lt.s32.totalorder %s19, 1
      %s209 = scalar_select %p208, %s19, 1
      %s210 = smul.addr %s209, 4
      %s211 = smul.addr %s210, 8
      %s212 = scalar_lea.vmem %s3, %s211
      %s213 = smul.u32 4, %s20
      %p214 = scmp.lt.s32.totalorder %s19, 1
      %s215 = scalar_select %p214, %s19, 1
      %p216 = scmp.lt.s32.totalorder %s213, 3
      %s217 = scalar_select %p216, %s213, 3
      %s218 = smul.addr %s215, 16
      %s219 = sadd.s32 %s217, %s218
      %s220 = smul.addr %s219, 8
      %s221 = scalar_lea.vmem %s0, %s220
      %s222 = smul.u32 4, %s20
      %p223 = scmp.lt.s32.totalorder %s19, 1
      %s224 = scalar_select %p223, %s19, 1
      %p225 = scmp.lt.s32.totalorder %s20, 0
      %s226 = scalar_select %p225, %s20, 0
      %s227 = sadd.s32 %s226, %s224
      %s228 = smul.addr %s227, 8
      %s229 = scalar_lea.vmem %s1, %s228
      %p230 = scmp.lt.s32.totalorder %s19, 1
      %s231 = scalar_select %p230, %s19, 1
      %s232 = smul.addr %s231, 4
      %s233 = smul.addr %s232, 8
      %s234 = scalar_lea.vmem %s2, %s233
      %p235 = scmp.lt.s32.totalorder %s19, 1
      %s236 = scalar_select %p235, %s19, 1
      %s237 = smul.addr %s236, 4
      %s238 = smul.addr %s237, 8
      %s239 = scalar_lea.vmem %s3, %s238
      %p240 = scmp.eq.s32.totalorder %s20, 0
      // Predicated region
      $region29: #{dice_loss.1} parent=27 // pred_check
        %p241 = pneg %p240
      $region30: #{dice_loss.1} parent=27 // pred_check_branch
        %243 = sbr.rel (%p241) target = $region32
      $region31: #{dice_loss.1} parent=27 // pred_region
        %244 = vst [vmem:[#allocation2] sm:$0xff] 0.0
        %245 = vst [vmem:[#allocation2 + $0x8] sm:$0xff] 0.0
        %246 = vst [vmem:[#allocation2 + $0x10] sm:$0xff] 0.0
        %247 = vst [vmem:[#allocation2 + $0x18] sm:$0xff] 0.0
        %248 = vst [vmem:[#allocation3] sm:$0xff] 0.0
        %249 = vst [vmem:[#allocation3 + $0x8] sm:$0xff] 0.0
        %250 = vst [vmem:[#allocation3 + $0x10] sm:$0xff] 0.0
        %251 = vst [vmem:[#allocation3 + $0x18] sm:$0xff] 0.0
      $region32: #{dice_loss.1} parent=27 // pred_fallthru
        _
      %v252 = vld [vmem:[%s229] sm:$0xff]
      %v253 = vunpack.c.0.s8 %v252
      %v254 = vunpack.c.1.s8 %v252
      %v255 = vunpack.c.2.s8 %v252
      %v256 = vunpack.c.3.s8 %v252
      %v257 = vld [vmem:[%s221] sm:$0xff]
      %v258 = vld [vmem:[%s221 + $0x8] sm:$0xff]
      %v259 = vld [vmem:[%s221 + $0x10] sm:$0xff]
      %v260 = vld [vmem:[%s221 + $0x18] sm:$0xff]
      %vm261 = vcmp.eq.s32.totalorder %v253, 0
      %vm262 = vcmp.eq.s32.totalorder %v254, 0
      %vm263 = vcmp.eq.s32.totalorder %v255, 0
      %vm264 = vcmp.eq.s32.totalorder %v256, 0
      %v265 = vmul.f32 %v257, %v257
      %v266 = vmul.f32 %v258, %v258
      %v267 = vmul.f32 %v259, %v259
      %v268 = vmul.f32 %v260, %v260
      %v269 = vsel %vm261, %v257, 0.0
      %v270 = vsel %vm262, %v258, 0.0
      %v271 = vsel %vm263, %v259, 0.0
      %v272 = vsel %vm264, %v260, 0.0
      %v273 = vadd.f32 %v265, 1.0
      %v274 = vadd.f32 %v266, 1.0
      %v275 = vadd.f32 %v267, 1.0
      %v276 = vadd.f32 %v268, 1.0
      %v277 = vsel %vm261, %v273, %v265
      %v278 = vsel %vm262, %v274, %v266
      %v279 = vsel %vm263, %v275, %v267
      %v280 = vsel %vm264, %v276, %v268
      %v281 = vld [vmem:[#allocation2] sm:$0xff]
      %v282 = vadd.f32 %v269, %v270
      %v283 = vadd.f32 %v282, %v271
      %v284 = vadd.f32 %v283, %v272
      %v285 = vadd.f32 %v281, %v284
      %286 = vst [vmem:[#allocation2] sm:$0xff] %v285
      %v287 = vld [vmem:[#allocation3] sm:$0xff]
      %v288 = vadd.f32 %v277, %v278
      %v289 = vadd.f32 %v288, %v279
      %v290 = vadd.f32 %v289, %v280
      %v291 = vadd.f32 %v287, %v290
      %292 = vst [vmem:[#allocation3] sm:$0xff] %v291
      %s293 = scalar_lea.vmem %s221, 32
      %v294 = vld [vmem:[%s293] sm:$0xff]
      %v295 = vld [vmem:[%s293 + $0x8] sm:$0xff]
      %v296 = vld [vmem:[%s293 + $0x10] sm:$0xff]
      %v297 = vld [vmem:[%s293 + $0x18] sm:$0xff]
      %vm298 = vcmp.eq.s32.totalorder %v253, 1
      %vm299 = vcmp.eq.s32.totalorder %v254, 1
      %vm300 = vcmp.eq.s32.totalorder %v255, 1
      %vm301 = vcmp.eq.s32.totalorder %v256, 1
      %v302 = vmul.f32 %v294, %v294
      %v303 = vmul.f32 %v295, %v295
      %v304 = vmul.f32 %v296, %v296
      %v305 = vmul.f32 %v297, %v297
      %v306 = vsel %vm298, %v294, 0.0
      %v307 = vsel %vm299, %v295, 0.0
      %v308 = vsel %vm300, %v296, 0.0
      %v309 = vsel %vm301, %v297, 0.0
      %v310 = vadd.f32 %v302, 1.0
      %v311 = vadd.f32 %v303, 1.0
      %v312 = vadd.f32 %v304, 1.0
      %v313 = vadd.f32 %v305, 1.0
      %v314 = vsel %vm298, %v310, %v302
      %v315 = vsel %vm299, %v311, %v303
      %v316 = vsel %vm300, %v312, %v304
      %v317 = vsel %vm301, %v313, %v305
      %s318 = scalar_lea.vmem [#allocation2], 8
      %v319 = vld [vmem:[%s318] sm:$0xff]
      %v320 = vadd.f32 %v306, %v307
      %v321 = vadd.f32 %v320, %v308
      %v322 = vadd.f32 %v321, %v309
      %v323 = vadd.f32 %v319, %v322
      %324 = vst [vmem:[%s318] sm:$0xff] %v323
      %s325 = scalar_lea.vmem [#allocation3], 8
      %v326 = vld [vmem:[%s325] sm:$0xff]
      %v327 = vadd.f32 %v314, %v315
      %v328 = vadd.f32 %v327, %v316
      %v329 = vadd.f32 %v328, %v317
      %v330 = vadd.f32 %v326, %v329
      %331 = vst [vmem:[%s325] sm:$0xff] %v330
      %s332 = scalar_lea.vmem %s221, 64
      %v333 = vld [vmem:[%s332] sm:$0xff]
      %v334 = vld [vmem:[%s332 + $0x8] sm:$0xff]
      %v335 = vld [vmem:[%s332 + $0x10] sm:$0xff]
      %v336 = vld [vmem:[%s332 + $0x18] sm:$0xff]
      %vm337 = vcmp.eq.s32.totalorder %v253, 2
      %vm338 = vcmp.eq.s32.totalorder %v254, 2
      %vm339 = vcmp.eq.s32.totalorder %v255, 2
      %vm340 = vcmp.eq.s32.totalorder %v256, 2
      %v341 = vmul.f32 %v333, %v333
      %v342 = vmul.f32 %v334, %v334
      %v343 = vmul.f32 %v335, %v335
      %v344 = vmul.f32 %v336, %v336
      %v345 = vsel %vm337, %v333, 0.0
      %v346 = vsel %vm338, %v334, 0.0
      %v347 = vsel %vm339, %v335, 0.0
      %v348 = vsel %vm340, %v336, 0.0
      %v349 = vadd.f32 %v341, 1.0
      %v350 = vadd.f32 %v342, 1.0
      %v351 = vadd.f32 %v343, 1.0
      %v352 = vadd.f32 %v344, 1.0
      %v353 = vsel %vm337, %v349, %v341
      %v354 = vsel %vm338, %v350, %v342
      %v355 = vsel %vm339, %v351, %v343
      %v356 = vsel %vm340, %v352, %v344
      %s357 = scalar_lea.vmem [#allocation2], 16
      %v358 = vld [vmem:[%s357] sm:$0xff]
      %v359 = vadd.f32 %v345, %v346
      %v360 = vadd.f32 %v359, %v347
      %v361 = vadd.f32 %v360, %v348
      %v362 = vadd.f32 %v358, %v361
      %363 = vst [vmem:[%s357] sm:$0xff] %v362
      %s364 = scalar_lea.vmem [#allocation3], 16
      %v365 = vld [vmem:[%s364] sm:$0xff]
      %v366 = vadd.f32 %v353, %v354
      %v367 = vadd.f32 %v366, %v355
      %v368 = vadd.f32 %v367, %v356
      %v369 = vadd.f32 %v365, %v368
      %370 = vst [vmem:[%s364] sm:$0xff] %v369
      %s371 = scalar_lea.vmem %s221, 96
      %v372 = vld [vmem:[%s371] sm:$0xff]
      %v373 = vld [vmem:[%s371 + $0x8] sm:$0xff]
      %v374 = vld [vmem:[%s371 + $0x10] sm:$0xff]
      %v375 = vld [vmem:[%s371 + $0x18] sm:$0xff]
      %vm376 = vcmp.eq.s32.totalorder %v253, 3
      %vm377 = vcmp.eq.s32.totalorder %v254, 3
      %vm378 = vcmp.eq.s32.totalorder %v255, 3
      %vm379 = vcmp.eq.s32.totalorder %v256, 3
      %v380 = vmul.f32 %v372, %v372
      %v381 = vmul.f32 %v373, %v373
      %v382 = vmul.f32 %v374, %v374
      %v383 = vmul.f32 %v375, %v375
      %v384 = vsel %vm376, %v372, 0.0
      %v385 = vsel %vm377, %v373, 0.0
      %v386 = vsel %vm378, %v374, 0.0
      %v387 = vsel %vm379, %v375, 0.0
      %v388 = vadd.f32 %v380, 1.0
      %v389 = vadd.f32 %v381, 1.0
      %v390 = vadd.f32 %v382, 1.0
      %v391 = vadd.f32 %v383, 1.0
      %v392 = vsel %vm376, %v388, %v380
      %v393 = vsel %vm377, %v389, %v381
      %v394 = vsel %vm378, %v390, %v382
      %v395 = vsel %vm379, %v391, %v383
      %s396 = scalar_lea.vmem [#allocation2], 24
      %v397 = vld [vmem:[%s396] sm:$0xff]
      %v398 = vadd.f32 %v384, %v385
      %v399 = vadd.f32 %v398, %v386
      %v400 = vadd.f32 %v399, %v387
      %v401 = vadd.f32 %v397, %v400
      %402 = vst [vmem:[%s396] sm:$0xff] %v401
      %s403 = scalar_lea.vmem [#allocation3], 24
      %v404 = vld [vmem:[%s403] sm:$0xff]
      %v405 = vadd.f32 %v392, %v393
      %v406 = vadd.f32 %v405, %v394
      %v407 = vadd.f32 %v406, %v395
      %v408 = vadd.f32 %v404, %v407
      %409 = vst [vmem:[%s403] sm:$0xff] %v408
      // Predicated region
      $region33: #{dice_loss.1} parent=27 // pred_check
        %p410 = pneg %p240
      $region34: #{dice_loss.1} parent=27 // pred_check_branch
        %412 = sbr.rel (%p410) target = $region36
      $region35: #{dice_loss.1} parent=27 // pred_region
        %v413 = vld [vmem:[#allocation2] sm:$0xff]
        %v414 = vld [vmem:[#allocation2 + $0x8] sm:$0xff]
        %v415 = vld [vmem:[#allocation2 + $0x10] sm:$0xff]
        %v416 = vld [vmem:[#allocation2 + $0x18] sm:$0xff]
        %417 = vst [vmem:[%s234] sm:$0xff] %v413
        %418 = vst [vmem:[%s234 + $0x8] sm:$0xff] %v414
        %419 = vst [vmem:[%s234 + $0x10] sm:$0xff] %v415
        %420 = vst [vmem:[%s234 + $0x18] sm:$0xff] %v416
        %v421 = vld [vmem:[#allocation3] sm:$0xff]
        %v422 = vld [vmem:[#allocation3 + $0x8] sm:$0xff]
        %v423 = vld [vmem:[#allocation3 + $0x10] sm:$0xff]
        %v424 = vld [vmem:[#allocation3 + $0x18] sm:$0xff]
        %425 = vst [vmem:[%s239] sm:$0xff] %v421
        %426 = vst [vmem:[%s239 + $0x8] sm:$0xff] %v422
        %427 = vst [vmem:[%s239 + $0x10] sm:$0xff] %v423
        %428 = vst [vmem:[%s239 + $0x18] sm:$0xff] %v424
      $region36: #{dice_loss.1} parent=27 // pred_fallthru
        _
      %p429 = scmp.lt.s32.totalorder %s19, 1
      %s430 = scalar_select %p429, %s19, 1
      %s431 = smul.addr %s430, 4
      %s432 = smul.addr %s431, 8
      %s433 = scalar_lea.vmem %s2, %s432
      %p434 = scmp.lt.s32.totalorder %s19, 1
      %s435 = scalar_select %p434, %s19, 1
      %s436 = smul.addr %s435, 4
      %s437 = smul.addr %s436, 8
      %s438 = scalar_lea.vmem %s3, %s437
      // Predicated region
      $region37: #{dice_loss.1} parent=27 // pred_check
        %p439 = pneg %p101
      $region38: #{dice_loss.1} parent=27 // pred_check_branch
        %441 = sbr.rel (%p439) target = $region40
      $region39: #{dice_loss.1} parent=27 // pred_region
        _
      $region40: #{dice_loss.1} parent=27 // pred_fallthru
        _
      // Predicated region
      $region41: #{dice_loss.1} parent=27 // pred_check
        %p442 = pneg %p127
      $region42: #{dice_loss.1} parent=27 // pred_check_branch
        %444 = sbr.rel (%p442) target = $region44
      $region43: #{dice_loss.1} parent=27 // pred_region
        _
      $region44: #{dice_loss.1} parent=27 // pred_fallthru
        _
    $region28: #{dice_loss.1} parent=5 // pred_fallthru
      _
    %p445 = scmp.le.s32.totalorder 2, %s10
    // Predicated region
    $region45: #{dice_loss.1} parent=5 // pred_check
      %p446 = pneg %p445
    $region46: #{dice_loss.1} parent=5 // pred_check_branch
      %448 = sbr.rel (%p446) target = $region48
    $region47: #{dice_loss.1} parent=5 // pred_region
      %s449 = ssub.s32 %s10, 2
      // Predicated region
      $region49: #{dice_loss.1} parent=47 // pred_check
        %p450 = pneg %p107
      $region50: #{dice_loss.1} parent=47 // pred_check_branch
        %452 = sbr.rel (%p450) target = $region52
      $region51: #{dice_loss.1} parent=47 // pred_region
        %p453 = scmp.lt.s32.totalorder %s21, 1
        %s454 = scalar_select %p453, %s21, 1
        %s455 = smul.addr %s454, 4
        %s456 = smul.addr %s455, 8
        %s457 = scalar_lea.vmem %s2, %s456
      $region52: #{dice_loss.1} parent=47 // pred_fallthru
        _
      // Predicated region
      $region53: #{dice_loss.1} parent=47 // pred_check
        %p458 = pneg %p133
      $region54: #{dice_loss.1} parent=47 // pred_check_branch
        %460 = sbr.rel (%p458) target = $region56
      $region55: #{dice_loss.1} parent=47 // pred_region
        %p461 = scmp.lt.s32.totalorder %s21, 1
        %s462 = scalar_select %p461, %s21, 1
        %s463 = smul.addr %s462, 4
        %s464 = smul.addr %s463, 8
        %s465 = scalar_lea.vmem %s3, %s464
      $region56: #{dice_loss.1} parent=47 // pred_fallthru
        _
    $region48: #{dice_loss.1} parent=5 // pred_fallthru
      _
  $region6: #{dice_loss.1} parent=0 // loop_footer
    %s14 = sadd.s32 1, %s10
  $region7: #{dice_loss.1} parent=0 // loop_footer_branch
    %9 = sbr.rel target = $region3
  $region8: #{dice_loss.1} parent=0 // loop_exit
    _

</llo_original>
